<compile_context>
chip_gen: v7x
topology: tpu7x:2x2x1
jax: 0.10.0
libtpu: 0.0.40
codegen_flags: <defaults>
</compile_context>

<pallas_src>
import functools

import jax
import jax.numpy as jnp
from jax import lax
from jax.experimental import pallas as pl
from jax.experimental.pallas import tpu as pltpu

AVG = 0.999            # BaseModel(avg=0.999)
WEIGHT_SCALE = 0.02    # BaseModel(weight_scale=...); 0 would give all-zeros


def _round_up(x, m):
    return ((x + m - 1) // m) * m


def _round_down(x, m):
    return (x // m) * m


def _hw_config():
    """(per-stream block bytes, scoped VMEM limit) tuned per TPU generation."""
    try:
        vmem = int(getattr(pltpu.get_tpu_info(), "vmem_capacity_bytes"))
    except Exception:
        # Unknown backend: conservative, known-good configuration.
        return 2 * 1024 * 1024, 32 * 1024 * 1024
    if vmem >= 96 * 1024 * 1024:
        # v5e / v6e (128 MiB physical VMEM): 4 MiB blocks cut the ~0.35 us
        # per-grid-step overhead to ~4%; 48 MiB scoped covers 3 streams x 2
        # buffers x 4 MiB plus Mosaic internal scratch for the f32 temporaries.
        return 4 * 1024 * 1024, 48 * 1024 * 1024
    # v7x: only 64 MiB VMEM per TC -> hold blocks at 2 MiB and cap the scoped
    # limit so the 6 pipeline buffers + compiler scratch keep ample headroom.
    return 2 * 1024 * 1024, 40 * 1024 * 1024


_HW_BLOCK_BYTES, _HW_VMEM_LIMIT = _hw_config()


def _choose_tiles(R, C, itemsize, target_bytes):
    """Pick a legal block (tr % sub == 0 or tr == R; tc % 128 == 0 or tc == C)
    whose *padded* VMEM footprint is ~target_bytes."""
    sub = max(8, 32 // itemsize)               # (8,128) f32 / (16,128) bf16 / (32,128) int8
    row_unit = R if R < sub else sub
    row_pad = _round_up(row_unit, sub)         # sublane padding of a minimal row block
    # Column tile: full rows if a minimal row block fits the budget, else a
    # lane-aligned chunk (the ragged column tail is masked in-kernel).
    if C <= 128 or C * row_pad * itemsize <= target_bytes:
        tc = C
    else:
        tc = max(128, _round_down(target_bytes // (row_pad * itemsize), 128))
        tc = min(tc, _round_up(C, 128))
    col_pad = _round_up(tc, 128)               # lane padding of the chosen column tile
    # Row tile: fill the remaining budget with whole sublane groups.
    if R <= sub:
        tr = R
    else:
        rows_target = max(sub, target_bytes // (col_pad * itemsize))
        tr = min(_round_up(R, sub), _round_up(rows_target, sub))
    return tr, tc


def _make_ema_norm_kernel(R, C, tr, tc, nr, nc):
    mask_rows = (nr * tr != R)
    mask_cols = (nc * tc != C)

    def kernel(parm_ref, pavg_ref, new_pavg_ref, partial_ref):
        p = parm_ref[...].astype(jnp.float32)
        a = pavg_ref[...].astype(jnp.float32)
        # average_iterates(): pavg.mul_(avg).add_((1 - avg) * parm)
        new_pavg_ref[...] = (AVG * a + (1.0 - AVG) * p).astype(new_pavg_ref.dtype)

        # update_status(): parm.norm() -> per-tile partial sum of squares.
        sq = p * p
        # Ragged tail blocks read unspecified data past the array edge.  The EMA
        # store above is masked automatically by Pallas; the reduction must mask
        # explicitly so garbage never reaches the norm.
        if mask_rows:
            rid = lax.broadcasted_iota(jnp.int32, (tr, tc), 0)
            sq = jnp.where(rid < R - pl.program_id(0) * tr, sq, 0.0)
        if mask_cols:
            cid = lax.broadcasted_iota(jnp.int32, (tr, tc), 1)
            sq = jnp.where(cid < C - pl.program_id(1) * tc, sq, 0.0)

        s = jnp.sum(sq)                        # full-tile reduce: XLU slot, idle here
        # Park the scalar at (0,0) of one (8,128) vreg: the partial output is a
        # single vreg per tile (8x narrower HBM write than a full-width partial).
        r8 = lax.broadcasted_iota(jnp.int32, (8, 128), 0)
        c8 = lax.broadcasted_iota(jnp.int32, (8, 128), 1)
        partial_ref[0, 0] = jnp.where((r8 == 0) & (c8 == 0), s, 0.0)

    return kernel


@functools.partial(jax.jit, static_argnames=("target_block_bytes",))
def ema_and_norm(parm, pavg, *, target_block_bytes=None):
    """Fused average_iterates() + update_status() norm for one parameter tensor.

    Returns (new_pavg with parm's shape/dtype, ||parm||_2 as an f32 scalar).
    """
    assert parm.shape == pavg.shape and parm.dtype == pavg.dtype
    orig_shape = parm.shape
    n = parm.size
    if n == 0:
        return pavg, jnp.float32(0.0)

    # 2-D view (R, C): a free bitcast of the contiguous array — no pad, no copy,
    # no slice-back.  Prefer the natural shape when the last dim is lane-sized;
    # otherwise pick a lane-friendly flat view.
    if parm.ndim >= 2 and orig_shape[-1] >= 128:
        C = int(orig_shape[-1])
        R = n // C
    else:
        C = next((w for w in (1024, 512, 256, 128) if n % w == 0), None)
        if C is None:
            R, C = 1, n
        else:
            R = n // C
    p2 = parm.reshape(R, C)
    a2 = pavg.reshape(R, C)

    itemsize = parm.dtype.itemsize             # dtype-aware sizing (bf16 halves traffic)
    block_bytes = _HW_BLOCK_BYTES if target_block_bytes is None else int(target_block_bytes)
    tr, tc = _choose_tiles(R, C, itemsize, block_bytes)
    nr = pl.cdiv(R, tr)
    nc = pl.cdiv(C, tc)

    kernel = _make_ema_norm_kernel(R, C, tr, tc, nr, nc)

    new_pavg2, partials = pl.pallas_call(
        kernel,
        out_shape=(
            jax.ShapeDtypeStruct((R, C), parm.dtype),
            jax.ShapeDtypeStruct((nr, nc, 8, 128), jnp.float32),
        ),
        grid_spec=pltpu.PrefetchScalarGridSpec(
            num_scalar_prefetch=0,
            grid=(nr, nc),
            in_specs=[
                pl.BlockSpec((tr, tc), lambda i, j: (i, j)),        # parm tile
                pl.BlockSpec((tr, tc), lambda i, j: (i, j)),        # pavg tile
            ],
            out_specs=(
                pl.BlockSpec((tr, tc), lambda i, j: (i, j)),        # new pavg tile
                pl.BlockSpec((1, 1, 8, 128), lambda i, j: (i, j, 0, 0)),  # per-tile partial
            ),
        ),
        # No input_output_aliases: donating pavg would clobber the caller's
        # buffer (which update_status()-style code still reads); opt-in via
        # jit donation if true in-place semantics are wanted.
        compiler_params=pltpu.CompilerParams(
            # Each tile writes only its own blocks (per-tile partials, no
            # cross-step state), so both axes shard safely across TensorCores.
            dimension_semantics=("parallel", "parallel"),
            vmem_limit_bytes=_HW_VMEM_LIMIT,
        ),
    )(p2, a2)

    new_pavg = new_pavg2.reshape(orig_shape)   # free bitcast (exact shape, no slicing)
    norm = jnp.sqrt(jnp.sum(partials))
    return new_pavg, norm


if __name__ == "__main__":
    key = jax.random.PRNGKey(0)
    keys = jax.random.split(key, 10)

    def make_pair(k0, k1, shape, dtype=jnp.float32):
        # __init__: parm ~ normal(0, weight_scale); averages = deepcopy(parm.data)
        parm = (WEIGHT_SCALE * jax.random.normal(k0, shape)).astype(dtype)
        pavg = parm
        # one "training step" moves parm away from its running average
        parm = (parm.astype(jnp.float32)
                - 0.01 * jax.random.normal(k1, shape)).astype(dtype)
        return parm, pavg

    cases = []
    # 1) m=128 square weight: single aligned block, lane-dense unmasked stores.
    cases.append(make_pair(keys[0], keys[1], (128, 128)) + (None,))
    # 2) odd shape + tiny blocks: multi-tile row grid with a masked ragged row tail.
    cases.append(make_pair(keys[2], keys[3], (300, 257)) + (32 * 1024,))
    # 3) wide rows + tiny blocks: column tiling with a masked ragged column tail.
    cases.append(make_pair(keys[4], keys[5], (16, 1000)) + (16 * 1024,))
    # 4) bf16 parameter: halves HBM traffic, exercises the (16,128) min tile.
    cases.append(make_pair(keys[6], keys[7], (100, 256), jnp.bfloat16) + (None,))
    # 5) small 1-D bias: (1, n) flat view, sub-lane-sized block equal to full dims.
    cases.append(make_pair(keys[8], keys[9], (77,)) + (None,))

    results = []
    for parm, pavg, tb in cases:
        if tb is None:
            results.append(ema_and_norm(parm, pavg))
        else:
            results.append(ema_and_norm(parm, pavg, target_block_bytes=tb))
    jax.block_until_ready(results)

    # Pure-JAX reference checks.
    for (parm, pavg, _), (new_pavg, norm) in zip(cases, results):
        p32 = parm.astype(jnp.float32)
        a32 = pavg.astype(jnp.float32)
        ref_pavg = (AVG * a32 + (1.0 - AVG) * p32).astype(parm.dtype)
        ref_norm = jnp.sqrt(jnp.sum(p32 * p32))
        tol = 2e-3 if parm.dtype == jnp.bfloat16 else 1e-5
        assert jnp.allclose(new_pavg.astype(jnp.float32),
                            ref_pavg.astype(jnp.float32),
                            atol=tol, rtol=tol), "EMA mismatch"
        assert jnp.allclose(norm, ref_norm, atol=1e-4, rtol=1e-4), "norm mismatch"

    print("KERNEL_OK")
</pallas_src>

<mosaic_0001>
module attributes {stable_mosaic.version = 11 : i64} {
  func.func @kernel(%arg0: i32, %arg1: i32, %arg2: memref<128x128xf32, #tpu.memory_space<vmem>>, %arg3: memref<128x128xf32, #tpu.memory_space<vmem>>, %arg4: memref<128x128xf32, #tpu.memory_space<vmem>>, %arg5: memref<1x1x8x128xf32, #tpu.memory_space<vmem>>) attributes {dimension_semantics = [#tpu.dimension_semantics<parallel>, #tpu.dimension_semantics<parallel>], iteration_bounds = array<i64: 1, 1>, scalar_prefetch = 0 : i64, scratch_operands = 0 : i64, tpu.core_type = #tpu.core_type<tc>, window_params = [{transform_indices = @transform_0, window_bounds = array<i64: 128, 128>}, {transform_indices = @transform_1, window_bounds = array<i64: 128, 128>}, {transform_indices = @transform_2, window_bounds = array<i64: 128, 128>}, {transform_indices = @transform_3, window_bounds = array<i64: 1, 1, 8, 128>}]} {
    %c0 = arith.constant 0 : index
    %c0_0 = arith.constant 0 : index
    %0 = vector.load %arg2[%c0, %c0_0] : memref<128x128xf32, #tpu.memory_space<vmem>>, vector<128x128xf32>
    %c0_1 = arith.constant 0 : index
    %c0_2 = arith.constant 0 : index
    %1 = vector.load %arg3[%c0_1, %c0_2] : memref<128x128xf32, #tpu.memory_space<vmem>>, vector<128x128xf32>
    %cst = arith.constant 9.990000e-01 : f32
    %2 = vector.broadcast %cst : f32 to vector<128x128xf32>
    %3 = arith.mulf %2, %1 : vector<128x128xf32>
    %cst_3 = arith.constant 1.000000e-03 : f32
    %4 = vector.broadcast %cst_3 : f32 to vector<128x128xf32>
    %5 = arith.mulf %4, %0 : vector<128x128xf32>
    %6 = arith.addf %3, %5 : vector<128x128xf32>
    %c0_4 = arith.constant 0 : index
    %c0_5 = arith.constant 0 : index
    %7 = vector.load %arg4[%c0_4, %c0_5] : memref<128x128xf32, #tpu.memory_space<vmem>>, vector<128x128xf32>
    tpu.vector_store %arg4[%c0_4, %c0_5], %6 {strides = array<i32>} : memref<128x128xf32, #tpu.memory_space<vmem>>, vector<128x128xf32>,
    %8 = arith.mulf %0, %0 : vector<128x128xf32>
    %9 = vector.shape_cast %8 : vector<128x128xf32> to vector<1x128x128xf32>
    %cst_6 = arith.constant dense<0.000000e+00> : vector<1xf32>
    %10 = vector.multi_reduction <add>, %9, %cst_6 [1, 2] : vector<1x128x128xf32> to vector<1xf32>
    %11 = vector.shape_cast %10 : vector<1xf32> to vector<1x1x1xf32>
    %12 = vector.extract %11[0, 0, 0] : f32 from vector<1x1x1xf32>
    %13 = tpu.iota {dimensions = array<i32: 0>} : vector<8x128xi32>
    %14 = tpu.iota {dimensions = array<i32: 1>} : vector<8x128xi32>
    %c0_i32 = arith.constant 0 : i32
    %15 = vector.broadcast %c0_i32 : i32 to vector<8x128xi32>
    %16 = arith.cmpi eq, %13, %15 : vector<8x128xi32>
    %c0_i32_7 = arith.constant 0 : i32
    %17 = vector.broadcast %c0_i32_7 : i32 to vector<8x128xi32>
    %18 = arith.cmpi eq, %14, %17 : vector<8x128xi32>
    %19 = arith.andi %16, %18 : vector<8x128xi1>
    %cst_8 = arith.constant 0.000000e+00 : f32
    %20 = vector.broadcast %12 : f32 to vector<8x128xf32>
    %21 = vector.broadcast %cst_8 : f32 to vector<8x128xf32>
    %22 = arith.select %19, %20, %21 : vector<8x128xi1>, vector<8x128xf32>
    %c0_9 = arith.constant 0 : index
    %c0_10 = arith.constant 0 : index
    %c0_11 = arith.constant 0 : index
    %c0_12 = arith.constant 0 : index
    %23 = vector.load %arg5[%c0_9, %c0_10, %c0_11, %c0_12] : memref<1x1x8x128xf32, #tpu.memory_space<vmem>>, vector<1x1x8x128xf32>
    %24 = vector.shape_cast %23 : vector<1x1x8x128xf32> to vector<8x128xf32>
    %25 = vector.shape_cast %22 : vector<8x128xf32> to vector<1x1x8x128xf32>
    tpu.vector_store %arg5[%c0_9, %c0_10, %c0_11, %c0_12], %25 {strides = array<i32>} : memref<1x1x8x128xf32, #tpu.memory_space<vmem>>, vector<1x1x8x128xf32>,
    return
  }
  func.func @transform_0(%arg0: i32, %arg1: i32) -> (i32, i32) {
    %c0_i32 = arith.constant 0 : i32
    return %arg0, %arg1 : i32, i32
  }
  func.func @transform_1(%arg0: i32, %arg1: i32) -> (i32, i32) {
    %c0_i32 = arith.constant 0 : i32
    return %arg0, %arg1 : i32, i32
  }
  func.func @transform_2(%arg0: i32, %arg1: i32) -> (i32, i32) {
    %c0_i32 = arith.constant 0 : i32
    return %arg0, %arg1 : i32, i32
  }
  func.func @transform_3(%arg0: i32, %arg1: i32) -> (i32, i32, i32, i32) {
    %c0_i32 = arith.constant 0 : i32
    %c0_i32_0 = arith.constant 0 : i32
    %c0_i32_1 = arith.constant 0 : i32
    return %arg0, %arg1, %c0_i32, %c0_i32_0 : i32, i32, i32, i32
  }
}

</mosaic_0001>

<llo_original>
// kernel: ema_and_norm.1
$region0: #{ema_and_norm.1}
  #allocation0 [shape = 'u32[]', space=smem, size = 0x4, offset = 0x4, fixed_abs, tag = 'smem constant byte address 0x4 - core index']
  #allocation1 [shape = 'u32[144,128]{1,0:T(1,128)}', space=vmem, size = 0x12000, scoped, tag = 'internal scratch']
  %s0 = inlined_call_operand.hbm [shape: f32[128,128], index: 0, kind: input, shape index: {}]
  %s1 = inlined_call_operand.hbm [shape: f32[128,128], index: 1, kind: input, shape index: {}]
  %s2 = inlined_call_operand.hbm [shape: f32[128,128], index: 2, kind: output, shape index: {0}]
  %s3 = inlined_call_operand.vmem [shape: f32[1,1,8,128], index: 3, kind: output, shape index: {1}]
  %4 = xla_tuple %s2, %s3
  %s5 = sld [smem:[#allocation0]]
  $region34: #{ema_and_norm.1} parent=0
    _
  %s7 = ssub.s32 1, %s5
  %s8 = scalar_select 0, %s7, %s5
  $region1: #{ema_and_norm.1} parent=0
    #allocation2 [shape = 'u8[65536]{0}', space=vmem, size = 0x10000, scoped, tag = 'input window, operand 0, single buffered']
    #allocation3 [shape = 's32[1]{0}', space=sflag, size = 0x4, scoped, tag = 'scoped memory for ema_and_norm.1']
    #allocation4 [shape = 's32[1]{0}', space=sflag, size = 0x4, scoped, tag = 'scoped memory for ema_and_norm.1']
    #allocation5 [shape = 'u8[65536]{0}', space=vmem, size = 0x10000, scoped, tag = 'input window, operand 1, single buffered']
    #allocation6 [shape = 's32[1]{0}', space=sflag, size = 0x4, scoped, tag = 'scoped memory for ema_and_norm.1']
    #allocation7 [shape = 'u8[65536]{0}', space=vmem, size = 0x10000, scoped, tag = 'output window, operand 0, single buffered']
    %9 = vsyncpa [#allocation3], 0
    %10 = vsyncpa [#allocation6], 0
    %11 = vsyncpa [#allocation4], 0
    // Predicated region
    $region2: #{ema_and_norm.1} parent=1 // pred_check
      _
    $region3: #{ema_and_norm.1} parent=1 // pred_check_branch
      %13 = sbr.rel (0) target = $region5
    $region4: #{ema_and_norm.1} parent=1 // pred_region
      %s15 = ssub.s32 2048, 2048
      %16 = vsyncadd [#allocation3], %s15
      %s17 = sshll.u32 [#allocation2], 4
      %s18 = int_to_ptr.vmem [resolvable:$true] %s17
      %23 = dma.hbm_to_vmem [thread:$0]  %s0, 2048, %s18, [#allocation3], 128, 128, 8
    $region5: #{ema_and_norm.1} parent=1 // pred_fallthru
      _
    // Predicated region
    $region6: #{ema_and_norm.1} parent=1 // pred_check
      _
    $region7: #{ema_and_norm.1} parent=1 // pred_check_branch
      %25 = sbr.rel (0) target = $region9
    $region8: #{ema_and_norm.1} parent=1 // pred_region
      %s27 = ssub.s32 2048, 2048
      %28 = vsyncadd [#allocation6], %s27
      %s29 = sshll.u32 [#allocation5], 4
      %s30 = int_to_ptr.vmem [resolvable:$true] %s29
      %35 = dma.hbm_to_vmem [thread:$0]  %s1, 2048, %s30, [#allocation6], 128, 128, 8
    $region9: #{ema_and_norm.1} parent=1 // pred_fallthru
      _
    // Predicated region
    $region10: #{ema_and_norm.1} parent=1 // pred_check
      _
    $region11: #{ema_and_norm.1} parent=1 // pred_check_branch
      %37 = sbr.rel (0) target = $region13
    $region12: #{ema_and_norm.1} parent=1 // pred_region
      %38 = dma.done [#allocation3], 2048
    $region13: #{ema_and_norm.1} parent=1 // pred_fallthru
      _
    // Predicated region
    $region14: #{ema_and_norm.1} parent=1 // pred_check
      _
    $region15: #{ema_and_norm.1} parent=1 // pred_check_branch
      %40 = sbr.rel (0) target = $region17
    $region16: #{ema_and_norm.1} parent=1 // pred_region
      %41 = dma.done [#allocation6], 2048
    $region17: #{ema_and_norm.1} parent=1 // pred_fallthru
      _
    %v42 = vld [vmem:[#allocation2] sm:$0xff]
    %v43 = vld [vmem:[#allocation2 + $0x8] sm:$0xff]
    %v44 = vld [vmem:[#allocation2 + $0x10] sm:$0xff]
    %v45 = vld [vmem:[#allocation2 + $0x18] sm:$0xff]
    %v46 = vld [vmem:[#allocation2 + $0x20] sm:$0xff]
    %v47 = vld [vmem:[#allocation2 + $0x28] sm:$0xff]
    %v48 = vld [vmem:[#allocation2 + $0x30] sm:$0xff]
    %v49 = vld [vmem:[#allocation2 + $0x38] sm:$0xff]
    %v50 = vld [vmem:[#allocation2 + $0x40] sm:$0xff]
    %v51 = vld [vmem:[#allocation2 + $0x48] sm:$0xff]
    %v52 = vld [vmem:[#allocation2 + $0x50] sm:$0xff]
    %v53 = vld [vmem:[#allocation2 + $0x58] sm:$0xff]
    %v54 = vld [vmem:[#allocation2 + $0x60] sm:$0xff]
    %v55 = vld [vmem:[#allocation2 + $0x68] sm:$0xff]
    %v56 = vld [vmem:[#allocation2 + $0x70] sm:$0xff]
    %v57 = vld [vmem:[#allocation2 + $0x78] sm:$0xff]
    %v58 = vld [vmem:[#allocation5] sm:$0xff]
    %v59 = vld [vmem:[#allocation5 + $0x8] sm:$0xff]
    %v60 = vld [vmem:[#allocation5 + $0x10] sm:$0xff]
    %v61 = vld [vmem:[#allocation5 + $0x18] sm:$0xff]
    %v62 = vld [vmem:[#allocation5 + $0x20] sm:$0xff]
    %v63 = vld [vmem:[#allocation5 + $0x28] sm:$0xff]
    %v64 = vld [vmem:[#allocation5 + $0x30] sm:$0xff]
    %v65 = vld [vmem:[#allocation5 + $0x38] sm:$0xff]
    %v66 = vld [vmem:[#allocation5 + $0x40] sm:$0xff]
    %v67 = vld [vmem:[#allocation5 + $0x48] sm:$0xff]
    %v68 = vld [vmem:[#allocation5 + $0x50] sm:$0xff]
    %v69 = vld [vmem:[#allocation5 + $0x58] sm:$0xff]
    %v70 = vld [vmem:[#allocation5 + $0x60] sm:$0xff]
    %v71 = vld [vmem:[#allocation5 + $0x68] sm:$0xff]
    %v72 = vld [vmem:[#allocation5 + $0x70] sm:$0xff]
    %v73 = vld [vmem:[#allocation5 + $0x78] sm:$0xff]
    %v74 = vmul.f32 %v58, 0.999
    %v75 = vmul.f32 %v59, 0.999
    %v76 = vmul.f32 %v60, 0.999
    %v77 = vmul.f32 %v61, 0.999
    %v78 = vmul.f32 %v62, 0.999
    %v79 = vmul.f32 %v63, 0.999
    %v80 = vmul.f32 %v64, 0.999
    %v81 = vmul.f32 %v65, 0.999
    %v82 = vmul.f32 %v66, 0.999
    %v83 = vmul.f32 %v67, 0.999
    %v84 = vmul.f32 %v68, 0.999
    %v85 = vmul.f32 %v69, 0.999
    %v86 = vmul.f32 %v70, 0.999
    %v87 = vmul.f32 %v71, 0.999
    %v88 = vmul.f32 %v72, 0.999
    %v89 = vmul.f32 %v73, 0.999
    %v90 = vmul.f32 %v42, 0.001
    %v91 = vmul.f32 %v43, 0.001
    %v92 = vmul.f32 %v44, 0.001
    %v93 = vmul.f32 %v45, 0.001
    %v94 = vmul.f32 %v46, 0.001
    %v95 = vmul.f32 %v47, 0.001
    %v96 = vmul.f32 %v48, 0.001
    %v97 = vmul.f32 %v49, 0.001
    %v98 = vmul.f32 %v50, 0.001
    %v99 = vmul.f32 %v51, 0.001
    %v100 = vmul.f32 %v52, 0.001
    %v101 = vmul.f32 %v53, 0.001
    %v102 = vmul.f32 %v54, 0.001
    %v103 = vmul.f32 %v55, 0.001
    %v104 = vmul.f32 %v56, 0.001
    %v105 = vmul.f32 %v57, 0.001
    %v106 = vadd.f32 %v74, %v90
    %v107 = vadd.f32 %v75, %v91
    %v108 = vadd.f32 %v76, %v92
    %v109 = vadd.f32 %v77, %v93
    %v110 = vadd.f32 %v78, %v94
    %v111 = vadd.f32 %v79, %v95
    %v112 = vadd.f32 %v80, %v96
    %v113 = vadd.f32 %v81, %v97
    %v114 = vadd.f32 %v82, %v98
    %v115 = vadd.f32 %v83, %v99
    %v116 = vadd.f32 %v84, %v100
    %v117 = vadd.f32 %v85, %v101
    %v118 = vadd.f32 %v86, %v102
    %v119 = vadd.f32 %v87, %v103
    %v120 = vadd.f32 %v88, %v104
    %v121 = vadd.f32 %v89, %v105
    %122 = vst [vmem:[#allocation7] sm:$0xff] %v106
    %123 = vst [vmem:[#allocation7 + $0x8] sm:$0xff] %v107
    %124 = vst [vmem:[#allocation7 + $0x10] sm:$0xff] %v108
    %125 = vst [vmem:[#allocation7 + $0x18] sm:$0xff] %v109
    %126 = vst [vmem:[#allocation7 + $0x20] sm:$0xff] %v110
    %127 = vst [vmem:[#allocation7 + $0x28] sm:$0xff] %v111
    %128 = vst [vmem:[#allocation7 + $0x30] sm:$0xff] %v112
    %129 = vst [vmem:[#allocation7 + $0x38] sm:$0xff] %v113
    %130 = vst [vmem:[#allocation7 + $0x40] sm:$0xff] %v114
    %131 = vst [vmem:[#allocation7 + $0x48] sm:$0xff] %v115
    %132 = vst [vmem:[#allocation7 + $0x50] sm:$0xff] %v116
    %133 = vst [vmem:[#allocation7 + $0x58] sm:$0xff] %v117
    %134 = vst [vmem:[#allocation7 + $0x60] sm:$0xff] %v118
    %135 = vst [vmem:[#allocation7 + $0x68] sm:$0xff] %v119
    %136 = vst [vmem:[#allocation7 + $0x70] sm:$0xff] %v120
    %137 = vst [vmem:[#allocation7 + $0x78] sm:$0xff] %v121
    %v138 = vmul.f32 %v42, %v42
    %v139 = vmul.f32 %v43, %v43
    %v140 = vmul.f32 %v44, %v44
    %v141 = vmul.f32 %v45, %v45
    %v142 = vmul.f32 %v46, %v46
    %v143 = vmul.f32 %v47, %v47
    %v144 = vmul.f32 %v48, %v48
    %v145 = vmul.f32 %v49, %v49
    %v146 = vmul.f32 %v50, %v50
    %v147 = vmul.f32 %v51, %v51
    %v148 = vmul.f32 %v52, %v52
    %v149 = vmul.f32 %v53, %v53
    %v150 = vmul.f32 %v54, %v54
    %v151 = vmul.f32 %v55, %v55
    %v152 = vmul.f32 %v56, %v56
    %v153 = vmul.f32 %v57, %v57
    %v154 = vadd.f32 %v138, %v139
    %v155 = vadd.f32 %v154, %v140
    %v156 = vadd.f32 %v155, %v141
    %v157 = vadd.f32 %v156, %v142
    %v158 = vadd.f32 %v157, %v143
    %v159 = vadd.f32 %v158, %v144
    %v160 = vadd.f32 %v159, %v145
    %v161 = vadd.f32 %v160, %v146
    %v162 = vadd.f32 %v161, %v147
    %v163 = vadd.f32 %v162, %v148
    %v164 = vadd.f32 %v163, %v149
    %v165 = vadd.f32 %v164, %v150
    %v166 = vadd.f32 %v165, %v151
    %v167 = vadd.f32 %v166, %v152
    %v168 = vadd.f32 %v167, %v153
    %169 = vadd.xlane.f32.xlu0 %v168
    %v170 = vpop.xlane.xlu0 %169
    %v171 = vrot.slane %v170, 4
    %v172 = vadd.f32 %v170, %v171
    %v173 = vrot.slane %v172, 2
    %v174 = vadd.f32 %v172, %v173
    %v175 = vrot.slane %v174, 1
    %v176 = vadd.f32 %v174, %v175
    %s177 = vtos %v176
    %v178 = vlaneseq
    %v179 = vshrl.u32 %v178, 7
    %v180 = vlaneseq
    %v181 = vand.u32 %v180, 127
    %vm182 = vcmp.eq.s32.totalorder %v179, 0
    %vm183 = vcmp.eq.s32.totalorder %v181, 0
    %vm184 = vmand %vm182, %vm183
    %v185 = vstv %s177
    %v186 = vsel %vm184, %v185, 0.0
    %187 = vst [vmem:[%s3] sm:$0xff] %v186
    // Predicated region
    $region18: #{ema_and_norm.1} parent=1 // pred_check
      _
    $region19: #{ema_and_norm.1} parent=1 // pred_check_branch
      %189 = sbr.rel (0) target = $region21
    $region20: #{ema_and_norm.1} parent=1 // pred_region
      %s191 = ssub.s32 2048, 2048
      %192 = vsyncadd [#allocation4], %s191
      %s193 = sshll.u32 [#allocation7], 4
      %s194 = int_to_ptr.vmem [resolvable:$true] %s193
      %199 = dma.vmem_to_hbm [thread:$0]  %s194, 2048, %s2, [#allocation4], 128, 128, 8
    $region21: #{ema_and_norm.1} parent=1 // pred_fallthru
      _
    // Predicated region
    $region22: #{ema_and_norm.1} parent=1 // pred_check
      _
    $region23: #{ema_and_norm.1} parent=1 // pred_check_branch
      %201 = sbr.rel (0) target = $region25
    $region24: #{ema_and_norm.1} parent=1 // pred_region
      _
    $region25: #{ema_and_norm.1} parent=1 // pred_fallthru
      _
    // Predicated region
    $region26: #{ema_and_norm.1} parent=1 // pred_check
      _
    $region27: #{ema_and_norm.1} parent=1 // pred_check_branch
      %203 = sbr.rel (0) target = $region29
    $region28: #{ema_and_norm.1} parent=1 // pred_region
      %204 = dma.done [#allocation4], 2048
    $region29: #{ema_and_norm.1} parent=1 // pred_fallthru
      _
    // Predicated region
    $region30: #{ema_and_norm.1} parent=1 // pred_check
      _
    $region31: #{ema_and_norm.1} parent=1 // pred_check_branch
      %206 = sbr.rel (0) target = $region33
    $region32: #{ema_and_norm.1} parent=1 // pred_region
      _
    $region33: #{ema_and_norm.1} parent=1 // pred_fallthru
      _
    %207 = vsyncpa [#allocation3], 1
    %208 = vsyncpa [#allocation6], 1
    %209 = vsyncpa [#allocation4], 1

</llo_original>
